<compile_context>
chip_gen: v7x
topology: tpu7x:2x2x1
jax: 0.10.0
libtpu: 0.0.40
codegen_flags: <defaults>
</compile_context>

<pallas_src>
import jax
import jax.numpy as jnp
from jax.experimental import pallas as pl
from jax.experimental.pallas import tpu as pltpu


def _round_up(x, m):
    return ((x + m - 1) // m) * m


def _vmem_specs(n):
    return [pl.BlockSpec(memory_space=pltpu.MemorySpace.VMEM) for _ in range(n)]


_COMPILER_PARAMS = pltpu.CompilerParams(vmem_limit_bytes=48 * 1024 * 1024)


# ---------------------------------------------------------------------------
# Step-invariant encoder projection: eproj = enc @ W_e + b   (once / sequence)
# ---------------------------------------------------------------------------
def _enc_proj_kernel(enc_ref, we_ref, ab_ref, out_ref):
    Bp, L, D2 = enc_ref.shape
    Hp = we_ref.shape[1]
    ep = jnp.dot(enc_ref[...].reshape(Bp * L, D2), we_ref[...],
                 preferred_element_type=jnp.float32) + ab_ref[...]
    out_ref[...] = ep.astype(jnp.bfloat16).reshape(Bp, L, Hp)


def encoder_projection(params, enc_bf):
    Bp, L, _ = enc_bf.shape
    Hp = params['Hp']
    return pl.pallas_call(
        _enc_proj_kernel,
        out_shape=jax.ShapeDtypeStruct((Bp, L, Hp), jnp.bfloat16),
        in_specs=_vmem_specs(3),
        out_specs=pl.BlockSpec(memory_space=pltpu.MemorySpace.VMEM),
        compiler_params=_COMPILER_PARAMS,
    )(enc_bf, params['attn_w_e'], params['attn_b'])


# ---------------------------------------------------------------------------
# Fused step kernel: attention -> context -> 2-layer GRU -> fused heads
# ---------------------------------------------------------------------------
def _make_decoder_step_kernel(head_pads, Hp):
    n_out = len(head_pads)
    offs = [0]
    for p in head_pads:
        offs.append(offs[-1] + p)

    def kernel(emb_ref, h0_ref, h1_ref, enc_ref, eproj_ref,
               awh_ref, av_ref,
               w0i_ref, w0h_ref, b0i_ref, b0h_ref,
               w1i_ref, w1h_ref, b1i_ref, b1h_ref,
               wout_ref, bout_ref,
               h0o_ref, h1o_ref, attn_ref, lp_ref):
        f32 = jnp.float32
        bf16 = jnp.bfloat16
        Bp, L, D2 = enc_ref.shape

        # ---- hoisted bf16 casts (each activation cast exactly once) --------
        h0 = h0_ref[...]
        h1 = h1_ref[...]
        h0_bf = h0.astype(bf16)
        h1_bf = h1.astype(bf16)
        emb_bf = emb_ref[...].astype(bf16)
        enc_bf = enc_ref[...]                                   # already bf16

        # ---- attention ------------------------------------------------------
        # hproj = h0 @ Wh0 + h1 @ Wh1  ==  [h0 ; h1] @ Wh   (one dot)
        h01_bf = jnp.concatenate([h0_bf, h1_bf], axis=1)        # (Bp, 2Hp)
        hproj = jnp.dot(h01_bf, awh_ref[...], preferred_element_type=f32)
        energy = jnp.tanh(eproj_ref[...] + hproj[:, None, :])   # (Bp, L, Hp) f32
        # scorer on the MXU: contract H, keep L lane-major for softmax/context
        v_b = jnp.broadcast_to(av_ref[...].reshape(1, 1, Hp), (Bp, 1, Hp))
        scores = jnp.einsum('bqh,blh->bql', v_b, energy.astype(bf16),
                            preferred_element_type=f32).reshape(Bp, L)
        m = jnp.max(scores, axis=1, keepdims=True)              # f32 softmax stats
        p = jnp.exp(scores - m)
        attn = p / jnp.sum(p, axis=1, keepdims=True)
        attn_ref[...] = attn

        # context on the MXU (batched contraction over L)
        ctx = jnp.einsum('bql,bld->bqd', attn[:, None, :].astype(bf16), enc_bf,
                         preferred_element_type=f32).reshape(Bp, D2)
        ctx_bf = ctx.astype(bf16)

        # ---- GRU layer 0, fused-gate dots (PyTorch gate order r,z,n) -------
        # rnn_input = [embedded ; context] (lane-aligned concat, one dot)
        rnn_in_bf = jnp.concatenate([emb_bf, ctx_bf], axis=1)
        gi0 = jnp.dot(rnn_in_bf, w0i_ref[...], preferred_element_type=f32) + b0i_ref[...]
        gh0 = jnp.dot(h0_bf, w0h_ref[...], preferred_element_type=f32) + b0h_ref[...]
        r0 = jax.nn.sigmoid(gi0[:, 0:Hp] + gh0[:, 0:Hp])
        z0 = jax.nn.sigmoid(gi0[:, Hp:2 * Hp] + gh0[:, Hp:2 * Hp])
        n0 = jnp.tanh(gi0[:, 2 * Hp:3 * Hp] + r0 * gh0[:, 2 * Hp:3 * Hp])
        h0_new = (1.0 - z0) * n0 + z0 * h0
        h0o_ref[...] = h0_new

        # ---- GRU layer 1 -----------------------------------------------------
        h0n_bf = h0_new.astype(bf16)
        gi1 = jnp.dot(h0n_bf, w1i_ref[...], preferred_element_type=f32) + b1i_ref[...]
        gh1 = jnp.dot(h1_bf, w1h_ref[...], preferred_element_type=f32) + b1h_ref[...]
        r1 = jax.nn.sigmoid(gi1[:, 0:Hp] + gh1[:, 0:Hp])
        z1 = jax.nn.sigmoid(gi1[:, Hp:2 * Hp] + gh1[:, Hp:2 * Hp])
        n1 = jnp.tanh(gi1[:, 2 * Hp:3 * Hp] + r1 * gh1[:, 2 * Hp:3 * Hp])
        h1_new = (1.0 - z1) * n1 + z1 * h1
        h1o_ref[...] = h1_new

        # ---- fused output heads: one lane-dense dot + per-segment log_softmax
        # out_combine = [gru_output ; context]; padded vocab lanes carry a
        # -1e30 bias (and zero weight columns) so exp() of them is exactly 0.
        out_in_bf = jnp.concatenate([h1_new.astype(bf16), ctx_bf], axis=1)
        logits = jnp.dot(out_in_bf, wout_ref[...],
                         preferred_element_type=f32) + bout_ref[...]
        for i in range(n_out):                 # static loop, 128-aligned slices
            seg = logits[:, offs[i]:offs[i + 1]]
            sm = jnp.max(seg, axis=1, keepdims=True)
            sh = seg - sm
            lse = jnp.log(jnp.sum(jnp.exp(sh), axis=1, keepdims=True))
            lp_ref[:, offs[i]:offs[i + 1]] = sh - lse

    return kernel


def decoder_step(params, emb, h0, h1, enc_bf, eproj):
    Bp, Hp = h0.shape
    L = enc_bf.shape[1]
    head_pads = params['head_pads']
    total_pad = sum(head_pads)

    args = (emb, h0, h1, enc_bf, eproj,
            params['attn_w_h'], params['attn_v'],
            params['w0i'], params['w0h'], params['b0i'], params['b0h'],
            params['w1i'], params['w1h'], params['b1i'], params['b1h'],
            params['out_w'], params['out_b'])

    return pl.pallas_call(
        _make_decoder_step_kernel(head_pads, Hp),
        out_shape=(jax.ShapeDtypeStruct((Bp, Hp), jnp.float32),        # h0_new
                   jax.ShapeDtypeStruct((Bp, Hp), jnp.float32),        # h1_new
                   jax.ShapeDtypeStruct((Bp, L), jnp.float32),         # attn weights
                   jax.ShapeDtypeStruct((Bp, total_pad), jnp.float32)),  # log-probs
        in_specs=_vmem_specs(len(args)),
        out_specs=tuple(_vmem_specs(4)),
        input_output_aliases={1: 0, 2: 1},    # update hidden state in place
        compiler_params=_COMPILER_PARAMS,
    )(*args)


# ---------------------------------------------------------------------------
# Forward pass (embedding gather in XLA + encoder-proj kernel + step kernel)
# ---------------------------------------------------------------------------
def decoder_rnn_forward(params, decoder_input, hidden, encoder_outputs):
    n_out = len(params['vocab_sizes'])
    B = decoder_input.shape[0]
    H, Hp, E, Ep = params['H'], params['Hp'], params['E'], params['Ep']
    L = encoder_outputs.shape[1]
    Bp = max(8, _round_up(B, 8))          # >=8 sublanes for every MXU / store

    # Embedding lookups (XLA gather; not a hot path).
    embs = [params['embeddings'][i][decoder_input[:, i, 0]] for i in range(n_out)]
    embedded = jnp.concatenate(embs, axis=1)                       # (B, E)
    # TODO(synk): F.dropout(p=0.1) is identity in eval mode; training-mode dropout not implemented.
    emb_p = jnp.zeros((Bp, Ep), jnp.float32).at[:B, :E].set(embedded)

    h0 = jnp.zeros((Bp, Hp), jnp.float32).at[:B, :H].set(hidden[0])
    h1 = jnp.zeros((Bp, Hp), jnp.float32).at[:B, :H].set(hidden[1])
    enc_bf = jnp.zeros((Bp, L, 2 * H), jnp.bfloat16).at[:B].set(
        encoder_outputs.astype(jnp.bfloat16))

    # Step-invariant: in a decode loop, compute once and reuse every step.
    eproj = encoder_projection(params, enc_bf)

    h0o, h1o, attn, lp = decoder_step(params, emb_p, h0, h1, enc_bf, eproj)

    new_hidden = jnp.stack([h0o[:B, :H], h1o[:B, :H]], axis=0)     # (2, B, H)
    attn_w = attn[:B, None, :]                                     # (B, 1, L)

    probs = []
    off = 0
    for i in range(n_out):
        V = params['vocab_sizes'][i]
        probs.append(lp[:B, off:off + V][:, None, :])              # (B, 1, V)
        off += params['head_pads'][i]
    return probs, new_hidden, attn_w


# ---------------------------------------------------------------------------
# Deterministic parameter construction (kernel-friendly, padded layout)
# ---------------------------------------------------------------------------
def make_params(key, H, vocab_sizes):
    n_out = len(vocab_sizes)
    emb_sizes = [int(v ** 0.7) for v in vocab_sizes]
    E = int(sum(emb_sizes))
    D2 = 2 * H
    Hp = _round_up(H, 128)                 # internal hidden width (lane-dense)
    Ep = _round_up(E, 128)                 # internal embedded width
    head_pads = [_round_up(v, 128) for v in vocab_sizes]
    NEG = -1e30
    f32, bf16 = jnp.float32, jnp.bfloat16

    keys = list(jax.random.split(key, 8 + 2 * n_out))
    it = iter(keys)

    def xavier(k, fan_in, fan_out, shape):
        bound = (6.0 / (fan_in + fan_out)) ** 0.5
        return jax.random.uniform(k, shape, f32, -bound, bound)

    def uni(k, fan_in, shape):
        bound = (3.0 / fan_in) ** 0.5
        return jax.random.uniform(k, shape, f32, -bound, bound)

    p = {'H': H, 'Hp': Hp, 'E': E, 'Ep': Ep,
         'head_pads': head_pads, 'vocab_sizes': list(vocab_sizes)}

    p['embeddings'] = [
        jax.random.normal(next(it), (vocab_sizes[i], emb_sizes[i]), f32)
        for i in range(n_out)]

    # AttentionLayer: Linear(4H, H) on [h0 ; h1 ; enc]; Linear(H, 1) scorer.
    w_attn = xavier(next(it), 4 * H, H, (4 * H, H))                # (in, out)
    awh = jnp.zeros((2 * Hp, Hp), f32)
    awh = awh.at[:H, :H].set(w_attn[:H])                           # h0 rows
    awh = awh.at[Hp:Hp + H, :H].set(w_attn[H:2 * H])               # h1 rows
    p['attn_w_h'] = awh.astype(bf16)                               # (2Hp, Hp)
    p['attn_w_e'] = jnp.zeros((D2, Hp), f32).at[:, :H].set(w_attn[2 * H:]).astype(bf16)
    p['attn_b'] = jnp.zeros((1, Hp), f32)
    p['attn_v'] = jnp.zeros((1, Hp), f32).at[0, :H].set(
        xavier(next(it), H, 1, (H,))).astype(bf16)

    def pad_gate_cols(w):                  # (Din, 3H) -> (Din, 3Hp), gates at g*Hp
        out = jnp.zeros((w.shape[0], 3 * Hp), f32)
        for g in range(3):
            out = out.at[:, g * Hp:g * Hp + H].set(w[:, g * H:(g + 1) * H])
        return out

    # GRU layer 0 (input = [embedded(E->Ep) ; context(2H)]).
    w_ih0 = pad_gate_cols(uni(next(it), E + D2, (E + D2, 3 * H)))
    w0i = jnp.zeros((Ep + D2, 3 * Hp), f32)
    w0i = w0i.at[:E].set(w_ih0[:E])                                # embedded rows
    w0i = w0i.at[Ep:Ep + D2].set(w_ih0[E:])                        # context rows
    p['w0i'] = w0i.astype(bf16)
    p['w0h'] = jnp.zeros((Hp, 3 * Hp), f32).at[:H].set(
        pad_gate_cols(uni(next(it), H, (H, 3 * H)))).astype(bf16)
    p['b0i'] = jnp.zeros((1, 3 * Hp), f32)
    p['b0h'] = jnp.zeros((1, 3 * Hp), f32)

    # GRU layer 1 (input = h0_new).
    p['w1i'] = jnp.zeros((Hp, 3 * Hp), f32).at[:H].set(
        pad_gate_cols(uni(next(it), H, (H, 3 * H)))).astype(bf16)
    p['w1h'] = jnp.zeros((Hp, 3 * Hp), f32).at[:H].set(
        pad_gate_cols(uni(next(it), H, (H, 3 * H)))).astype(bf16)
    p['b1i'] = jnp.zeros((1, 3 * Hp), f32)
    p['b1h'] = jnp.zeros((1, 3 * Hp), f32)

    # Output heads fused into one lane-dense matmul over padded vocab segments.
    total_pad = sum(head_pads)
    w_out = jnp.zeros((Hp + D2, total_pad), f32)
    b_out = jnp.full((1, total_pad), NEG, f32)
    off = 0
    for i in range(n_out):
        V = vocab_sizes[i]
        w = xavier(next(it), 3 * H, V, (3 * H, V))
        w_out = w_out.at[:H, off:off + V].set(w[:H])               # gru-output part
        w_out = w_out.at[Hp:Hp + D2, off:off + V].set(w[H:])       # context part
        b_out = b_out.at[:, off:off + V].set(0.0)
        off += head_pads[i]
    p['out_w'] = w_out.astype(bf16)
    p['out_b'] = b_out
    return p, emb_sizes


if __name__ == "__main__":
    B, H, L = 2, 32, 16
    vocab_sizes = [12, 20, 8]
    n_out = len(vocab_sizes)

    key = jax.random.PRNGKey(0)
    k_params, k_in, k_h, k_enc = jax.random.split(key, 4)
    params, emb_sizes = make_params(k_params, H, vocab_sizes)

    tok_keys = jax.random.split(k_in, n_out)
    decoder_input = jnp.stack(
        [jax.random.randint(tok_keys[i], (B, 1), 0, vocab_sizes[i])
         for i in range(n_out)], axis=1).astype(jnp.int32)        # (B, n_out, 1)
    hidden = jax.random.normal(k_h, (2, B, H), jnp.float32)       # (2, B, H)
    encoder_outputs = jax.random.normal(k_enc, (B, L, 2 * H), jnp.float32)

    probs, new_hidden, attn_w = decoder_rnn_forward(
        params, decoder_input, hidden, encoder_outputs)
    jax.block_until_ready((probs, new_hidden, attn_w))

    assert all(p.shape == (B, 1, vocab_sizes[i]) for i, p in enumerate(probs))
    assert new_hidden.shape == (2, B, H)
    assert attn_w.shape == (B, 1, L)
    # log_softmax rows should sum to ~1 in prob space
    assert all(bool(jnp.allclose(jnp.sum(jnp.exp(p), axis=2), 1.0, atol=1e-4))
               for p in probs)
    # attention weights should sum to ~1 over L
    assert bool(jnp.allclose(jnp.sum(attn_w, axis=2), 1.0, atol=1e-4))
    print("KERNEL_OK")
</pallas_src>

<mosaic_0001>
module attributes {stable_mosaic.version = 11 : i64} {
  func.func @_enc_proj_kernel(%arg0: memref<8x16x64xbf16, #tpu.memory_space<vmem>>, %arg1: memref<64x128xbf16, #tpu.memory_space<vmem>>, %arg2: memref<1x128xf32, #tpu.memory_space<vmem>>, %arg3: memref<8x16x128xbf16, #tpu.memory_space<vmem>>) attributes {dimension_semantics = [], scalar_prefetch = 0 : i64, scratch_operands = 0 : i64, tpu.core_type = #tpu.core_type<tc>} {
    %c0 = arith.constant 0 : index
    %c0_0 = arith.constant 0 : index
    %c0_1 = arith.constant 0 : index
    %0 = vector.load %arg0[%c0, %c0_0, %c0_1] : memref<8x16x64xbf16, #tpu.memory_space<vmem>>, vector<8x16x64xbf16>
    %1 = vector.shape_cast %0 : vector<8x16x64xbf16> to vector<128x64xbf16>
    %c0_2 = arith.constant 0 : index
    %c0_3 = arith.constant 0 : index
    %2 = vector.load %arg1[%c0_2, %c0_3] : memref<64x128xbf16, #tpu.memory_space<vmem>>, vector<64x128xbf16>
    %cst = arith.constant dense<0.000000e+00> : vector<128x128xf32>
    %3 = tpu.matmul %1, %2, %cst {dimension_numbers = #tpu.dot_dimension_numbers<[1], [0], [0], [1], [0, 0, 1, 1], [], []>} : vector<128x64xbf16>, vector<64x128xbf16>, vector<128x128xf32> -> vector<128x128xf32>
    %c0_4 = arith.constant 0 : index
    %c0_5 = arith.constant 0 : index
    %4 = vector.load %arg2[%c0_4, %c0_5] : memref<1x128xf32, #tpu.memory_space<vmem>>, vector<1x128xf32>
    %5 = vector.broadcast %4 : vector<1x128xf32> to vector<128x128xf32>
    %6 = arith.addf %3, %5 : vector<128x128xf32>
    %7 = arith.truncf %6 : vector<128x128xf32> to vector<128x128xbf16>
    %8 = vector.shape_cast %7 : vector<128x128xbf16> to vector<8x16x128xbf16>
    %c0_6 = arith.constant 0 : index
    %c0_7 = arith.constant 0 : index
    %c0_8 = arith.constant 0 : index
    %9 = vector.load %arg3[%c0_6, %c0_7, %c0_8] : memref<8x16x128xbf16, #tpu.memory_space<vmem>>, vector<8x16x128xbf16>
    tpu.vector_store %arg3[%c0_6, %c0_7, %c0_8], %8 {strides = array<i32>} : memref<8x16x128xbf16, #tpu.memory_space<vmem>>, vector<8x16x128xbf16>,
    return
  }
}

</mosaic_0001>

<llo_original>
// kernel: tpu_custom_call.1
$region0: #{tpu_custom_call.1}
  #allocation0 [shape = 'u32[]', space=smem, size = 0x4, offset = 0x4, fixed_abs, tag = 'smem constant byte address 0x4 - core index']
  #allocation1 [shape = 'u32[144,128]{1,0:T(1,128)}', space=vmem, size = 0x12000, scoped, tag = 'internal scratch']
  %s0 = inlined_call_operand.hbm [shape: bf16[8,16,64], index: 0, kind: input, shape index: {}]
  %s1 = inlined_call_operand.hbm [shape: bf16[64,128], index: 1, kind: input, shape index: {}]
  %s2 = inlined_call_operand.vmem [shape: f32[1,128], index: 2, kind: input, shape index: {}]
  %s3 = inlined_call_operand.hbm [shape: bf16[8,16,128], index: 3, kind: output, shape index: {}]
  %s4 = sld [smem:[#allocation0]]
  $region30: #{tpu_custom_call.1} parent=0
    _
  %s6 = ssub.s32 1, %s4
  %s7 = scalar_select 0, %s6, %s4
  $region1: #{tpu_custom_call.1} parent=0
    #allocation2 [shape = 'u8[32768]{0}', space=vmem, size = 0x8000, scoped, tag = 'input window, operand 0, single buffered']
    #allocation3 [shape = 's32[1]{0}', space=sflag, size = 0x4, scoped, tag = 'scoped memory for tpu_custom_call.1']
    #allocation4 [shape = 's32[1]{0}', space=sflag, size = 0x4, scoped, tag = 'scoped memory for tpu_custom_call.1']
    #allocation5 [shape = 'u8[16384]{0}', space=vmem, size = 0x4000, scoped, tag = 'input window, operand 1, single buffered']
    #allocation6 [shape = 's32[1]{0}', space=sflag, size = 0x4, scoped, tag = 'scoped memory for tpu_custom_call.1']
    #allocation7 [shape = 'u8[32768]{0}', space=vmem, size = 0x8000, scoped, tag = 'output window, operand 0, single buffered']
    %8 = vsyncpa [#allocation3], 0
    %9 = vsyncpa [#allocation6], 0
    %10 = vsyncpa [#allocation4], 0
    // Predicated region
    $region2: #{tpu_custom_call.1} parent=1 // pred_check
      _
    $region3: #{tpu_custom_call.1} parent=1 // pred_check_branch
      %12 = sbr.rel (0) target = $region5
    $region4: #{tpu_custom_call.1} parent=1 // pred_region
      %s14 = ssub.s32 1024, 1024
      %15 = vsyncadd [#allocation3], %s14
      %s16 = sshll.u32 [#allocation2], 4
      %s17 = int_to_ptr.vmem [resolvable:$true] %s16
      %22 = dma.hbm_to_vmem [thread:$0]  %s0, 1024, %s17, [#allocation3], 64, 64, 4
    $region5: #{tpu_custom_call.1} parent=1 // pred_fallthru
      _
    // Predicated region
    $region6: #{tpu_custom_call.1} parent=1 // pred_check
      _
    $region7: #{tpu_custom_call.1} parent=1 // pred_check_branch
      %24 = sbr.rel (0) target = $region9
    $region8: #{tpu_custom_call.1} parent=1 // pred_region
      %s26 = ssub.s32 512, 512
      %27 = vsyncadd [#allocation6], %s26
      %s28 = sshll.u32 [#allocation5], 4
      %s29 = int_to_ptr.vmem [resolvable:$true] %s28
      %34 = dma.hbm_to_vmem [thread:$0]  %s1, 512, %s29, [#allocation6], 64, 64, 4
    $region9: #{tpu_custom_call.1} parent=1 // pred_fallthru
      _
    // Predicated region
    $region10: #{tpu_custom_call.1} parent=1 // pred_check
      _
    $region11: #{tpu_custom_call.1} parent=1 // pred_check_branch
      %36 = sbr.rel (0) target = $region13
    $region12: #{tpu_custom_call.1} parent=1 // pred_region
      _
    $region13: #{tpu_custom_call.1} parent=1 // pred_fallthru
      _
    // Predicated region
    $region14: #{tpu_custom_call.1} parent=1 // pred_check
      _
    $region15: #{tpu_custom_call.1} parent=1 // pred_check_branch
      %38 = sbr.rel (0) target = $region17
    $region16: #{tpu_custom_call.1} parent=1 // pred_region
      %39 = dma.done [#allocation3], 1024
    $region17: #{tpu_custom_call.1} parent=1 // pred_fallthru
      _
    // Predicated region
    $region18: #{tpu_custom_call.1} parent=1 // pred_check
      _
    $region19: #{tpu_custom_call.1} parent=1 // pred_check_branch
      %41 = sbr.rel (0) target = $region21
    $region20: #{tpu_custom_call.1} parent=1 // pred_region
      %42 = dma.done [#allocation6], 512
    $region21: #{tpu_custom_call.1} parent=1 // pred_fallthru
      _
    %v44 = vld [vmem:[#allocation2] sm:$0xf]
    %v45 = vld [vmem:[#allocation2 + $0x4] sm:$0xf]
    %v46 = vld [vmem:[#allocation2 + $0x8] sm:$0xf]
    %v47 = vld [vmem:[#allocation2 + $0xc] sm:$0xf]
    %v48 = vld [vmem:[#allocation2 + $0x10] sm:$0xf]
    %v49 = vld [vmem:[#allocation2 + $0x14] sm:$0xf]
    %v50 = vld [vmem:[#allocation2 + $0x18] sm:$0xf]
    %v51 = vld [vmem:[#allocation2 + $0x1c] sm:$0xf]
    %v52 = vld [vmem:[#allocation2 + $0x20] sm:$0xf]
    %v53 = vld [vmem:[#allocation2 + $0x24] sm:$0xf]
    %v54 = vld [vmem:[#allocation2 + $0x28] sm:$0xf]
    %v55 = vld [vmem:[#allocation2 + $0x2c] sm:$0xf]
    %v56 = vld [vmem:[#allocation2 + $0x30] sm:$0xf]
    %v57 = vld [vmem:[#allocation2 + $0x34] sm:$0xf]
    %v58 = vld [vmem:[#allocation2 + $0x38] sm:$0xf]
    %v59 = vld [vmem:[#allocation2 + $0x3c] sm:$0xf]
    %v60 = vld [vmem:[#allocation5] sm:$0xf]
    %v61 = vld [vmem:[#allocation5 + $0x4] sm:$0xf]
    %v62 = vld [vmem:[#allocation5 + $0x8] sm:$0xf]
    %v63 = vld [vmem:[#allocation5 + $0xc] sm:$0xf]
    %v64 = vld [vmem:[#allocation5 + $0x10] sm:$0xf]
    %v65 = vld [vmem:[#allocation5 + $0x14] sm:$0xf]
    %v66 = vld [vmem:[#allocation5 + $0x18] sm:$0xf]
    %v67 = vld [vmem:[#allocation5 + $0x1c] sm:$0xf]
    %v68 = vld [vmem:[%s2] sm:$0x1]
    %v70 = vlaneseq
    %v71 = vshrl.u32 %v70, 7
    %v72 = vsub.s32 0, %v71
    %v73 = vrot.slane %v68, %v72
    %v91 = vunpack.c.l.b16 %v44
    %v92 = vunpack.c.l.b16 %v45
    %v93 = vunpack.c.l.b16 %v46
    %v94 = vunpack.c.l.b16 %v47
    %v95 = vunpack.c.l.b16 %v48
    %v96 = vunpack.c.l.b16 %v49
    %v97 = vunpack.c.l.b16 %v50
    %v98 = vunpack.c.l.b16 %v51
    %v99 = vunpack.c.l.b16 %v52
    %v100 = vunpack.c.l.b16 %v53
    %v101 = vunpack.c.l.b16 %v54
    %v102 = vunpack.c.l.b16 %v55
    %v103 = vunpack.c.l.b16 %v56
    %v104 = vunpack.c.l.b16 %v57
    %v105 = vunpack.c.l.b16 %v58
    %v106 = vunpack.c.l.b16 %v59
    %v107 = vpack.c.b16 %v92, %v91
    %v108 = vpack.c.b16 %v94, %v93
    %v109 = vpack.c.b16 %v96, %v95
    %v110 = vpack.c.b16 %v98, %v97
    %v111 = vpack.c.b16 %v100, %v99
    %v112 = vpack.c.b16 %v102, %v101
    %v113 = vpack.c.b16 %v104, %v103
    %v114 = vpack.c.b16 %v106, %v105
    %v123 = vunpack.c.l.b16 %v60
    %v124 = vunpack.c.l.b16 %v61
    %v125 = vunpack.c.l.b16 %v62
    %v126 = vunpack.c.l.b16 %v63
    %v127 = vunpack.c.l.b16 %v64
    %v128 = vunpack.c.l.b16 %v65
    %v129 = vunpack.c.l.b16 %v66
    %v130 = vunpack.c.l.b16 %v67
    %v131 = vpack.c.b16 %v124, %v123
    %v132 = vpack.c.b16 %v126, %v125
    %v133 = vpack.c.b16 %v128, %v127
    %v134 = vpack.c.b16 %v130, %v129
    %vm139 = vcmask 523264
    %v141 = vsel %vm139, %v107, 0
    %v144 = vsel %vm139, %v108, 0
    %v147 = vsel %vm139, %v109, 0
    %v150 = vsel %vm139, %v110, 0
    %v153 = vsel %vm139, %v111, 0
    %v156 = vsel %vm139, %v112, 0
    %v159 = vsel %vm139, %v113, 0
    %v162 = vsel %vm139, %v114, 0
    %164 = vmatprep.subr.bf16.mxu0 0
    %165 = vmatpush1.bf16.msra.mxu0 %v131
    %166 = vmatprep.subr.bf16.mxu0 0
    %167 = vmatpush1.bf16.msra.mxu0 %v132
    %168 = vmatprep.subr.bf16.mxu0 0
    %169 = vmatpush1.bf16.msra.mxu0 %v133
    %170 = vmatprep.subr.bf16.mxu0 0
    %171 = vmatpush1.bf16.msra.mxu0 %v134
    %172 = vmatprep.subr.bf16.mxu0 0
    %173 = vmatpush1.bf16.msra.mxu0 0
    %174 = vmatprep.subr.bf16.mxu0 0
    %175 = vmatpush1.bf16.msra.mxu0 0
    %176 = vmatprep.subr.bf16.mxu0 0
    %177 = vmatpush1.bf16.msra.mxu0 0
    %178 = vmatprep.subr.bf16.mxu0 0
    %179 = vmatpush1.bf16.msra.mxu0 0
    %180 = vmatprep.subr.bf16.mxu0 0
    %181 = vmatpush1.bf16.msra.mxu0 0
    %182 = vmatprep.subr.bf16.mxu0 0
    %183 = vmatpush1.bf16.msra.mxu0 0
    %184 = vmatprep.subr.bf16.mxu0 0
    %185 = vmatpush1.bf16.msra.mxu0 0
    %186 = vmatprep.subr.bf16.mxu0 0
    %187 = vmatpush1.bf16.msra.mxu0 0
    %188 = vmatprep.subr.bf16.mxu0 0
    %189 = vmatpush1.bf16.msra.mxu0 0
    %190 = vmatprep.subr.bf16.mxu0 0
    %191 = vmatpush1.bf16.msra.mxu0 0
    %192 = vmatprep.subr.bf16.mxu0 0
    %193 = vmatpush1.bf16.msra.mxu0 0
    %194 = vmatprep.subr.bf16.mxu0 0
    %195 = vmatpush1.bf16.msra.mxu0 0
    %196 = vmatprep.mubr.bf16.mxu0 0
    %197 = vmatmul.mubr.bf16.gmra.mrb[0].mxu0 %v141
    %v198 = vpop.f32.mrb[0].mxu0
    %v199 = vadd.f32 %v73, %v198
    %v200 = vpop.f32.mrb[0].mxu0
    %v201 = vpop.f32.mrb[0].mxu0
    %v202 = vadd.f32 %v73, %v201
    %v203 = vpop.f32.mrb[0].mxu0
    %204 = vmatprep.mubr.bf16.mxu0 0
    %205 = vmatmul.mubr.bf16.gmra.mrb[0].mxu0 %v144
    %v206 = vpop.f32.mrb[0].mxu0
    %v207 = vadd.f32 %v73, %v206
    %v208 = vpop.f32.mrb[0].mxu0
    %v209 = vpop.f32.mrb[0].mxu0
    %v210 = vadd.f32 %v73, %v209
    %v211 = vpop.f32.mrb[0].mxu0
    %212 = vmatprep.mubr.bf16.mxu0 0
    %213 = vmatmul.mubr.bf16.gmra.mrb[0].mxu0 %v147
    %v214 = vpop.f32.mrb[0].mxu0
    %v215 = vadd.f32 %v73, %v214
    %v216 = vpop.f32.mrb[0].mxu0
    %v217 = vpop.f32.mrb[0].mxu0
    %v218 = vadd.f32 %v73, %v217
    %v219 = vpop.f32.mrb[0].mxu0
    %220 = vmatprep.mubr.bf16.mxu0 0
    %221 = vmatmul.mubr.bf16.gmra.mrb[0].mxu0 %v150
    %v222 = vpop.f32.mrb[0].mxu0
    %v223 = vadd.f32 %v73, %v222
    %v224 = vpop.f32.mrb[0].mxu0
    %v225 = vpop.f32.mrb[0].mxu0
    %v226 = vadd.f32 %v73, %v225
    %v227 = vpop.f32.mrb[0].mxu0
    %228 = vmatprep.mubr.bf16.mxu0 0
    %229 = vmatmul.mubr.bf16.gmra.mrb[0].mxu0 %v153
    %v230 = vpop.f32.mrb[0].mxu0
    %v231 = vadd.f32 %v73, %v230
    %v232 = vpop.f32.mrb[0].mxu0
    %v233 = vpop.f32.mrb[0].mxu0
    %v234 = vadd.f32 %v73, %v233
    %v235 = vpop.f32.mrb[0].mxu0
    %236 = vmatprep.mubr.bf16.mxu0 0
    %237 = vmatmul.mubr.bf16.gmra.mrb[0].mxu0 %v156
    %v238 = vpop.f32.mrb[0].mxu0
    %v239 = vadd.f32 %v73, %v238
    %v240 = vpop.f32.mrb[0].mxu0
    %v241 = vpop.f32.mrb[0].mxu0
    %v242 = vadd.f32 %v73, %v241
    %v243 = vpop.f32.mrb[0].mxu0
    %244 = vmatprep.mubr.bf16.mxu0 0
    %245 = vmatmul.mubr.bf16.gmra.mrb[0].mxu0 %v159
    %v246 = vpop.f32.mrb[0].mxu0
    %v247 = vadd.f32 %v73, %v246
    %v248 = vpop.f32.mrb[0].mxu0
    %v249 = vpop.f32.mrb[0].mxu0
    %v250 = vadd.f32 %v73, %v249
    %v251 = vpop.f32.mrb[0].mxu0
    %252 = vmatprep.mubr.bf16.mxu0 0
    %253 = vmatmul.mubr.bf16.gmra.mrb[0].mxu0 %v162
    %v254 = vpop.f32.mrb[0].mxu0
    %v255 = vadd.f32 %v73, %v254
    %v256 = vpop.f32.mrb[0].mxu0
    %v257 = vpop.f32.mrb[0].mxu0
    %v258 = vadd.f32 %v73, %v257
    %v259 = vpop.f32.mrb[0].mxu0
    %260 = vdwg.mxu0
    %v261 = vpack.c.bf16 %v202, %v199
    %v262 = vpack.c.bf16 %v210, %v207
    %v263 = vpack.c.bf16 %v218, %v215
    %v264 = vpack.c.bf16 %v226, %v223
    %v265 = vpack.c.bf16 %v234, %v231
    %v266 = vpack.c.bf16 %v242, %v239
    %v267 = vpack.c.bf16 %v250, %v247
    %v268 = vpack.c.bf16 %v258, %v255
    %v277 = vunpack.c.l.b16 %v261
    %v278 = vunpack.c.h.b16 %v261
    %v279 = vunpack.c.l.b16 %v262
    %v280 = vunpack.c.h.b16 %v262
    %v281 = vunpack.c.l.b16 %v263
    %v282 = vunpack.c.h.b16 %v263
    %v283 = vunpack.c.l.b16 %v264
    %v284 = vunpack.c.h.b16 %v264
    %v285 = vunpack.c.l.b16 %v265
    %v286 = vunpack.c.h.b16 %v265
    %v287 = vunpack.c.l.b16 %v266
    %v288 = vunpack.c.h.b16 %v266
    %v289 = vunpack.c.l.b16 %v267
    %v290 = vunpack.c.h.b16 %v267
    %v291 = vunpack.c.l.b16 %v268
    %v292 = vunpack.c.h.b16 %v268
    %v293 = vpack.c.b16 %v277, %v277
    %v294 = vpack.c.b16 %v278, %v278
    %v295 = vpack.c.b16 %v279, %v279
    %v296 = vpack.c.b16 %v280, %v280
    %v297 = vpack.c.b16 %v281, %v281
    %v298 = vpack.c.b16 %v282, %v282
    %v299 = vpack.c.b16 %v283, %v283
    %v300 = vpack.c.b16 %v284, %v284
    %v301 = vpack.c.b16 %v285, %v285
    %v302 = vpack.c.b16 %v286, %v286
    %v303 = vpack.c.b16 %v287, %v287
    %v304 = vpack.c.b16 %v288, %v288
    %v305 = vpack.c.b16 %v289, %v289
    %v306 = vpack.c.b16 %v290, %v290
    %v307 = vpack.c.b16 %v291, %v291
    %v308 = vpack.c.b16 %v292, %v292
    %325 = vst [vmem:[#allocation7] sm:$0xf] %v293
    %326 = vst [vmem:[#allocation7 + $0x4] sm:$0xf] %v294
    %327 = vst [vmem:[#allocation7 + $0x8] sm:$0xf] %v295
    %328 = vst [vmem:[#allocation7 + $0xc] sm:$0xf] %v296
    %329 = vst [vmem:[#allocation7 + $0x10] sm:$0xf] %v297
    %330 = vst [vmem:[#allocation7 + $0x14] sm:$0xf] %v298
    %331 = vst [vmem:[#allocation7 + $0x18] sm:$0xf] %v299
    %332 = vst [vmem:[#allocation7 + $0x1c] sm:$0xf] %v300
    %333 = vst [vmem:[#allocation7 + $0x20] sm:$0xf] %v301
    %334 = vst [vmem:[#allocation7 + $0x24] sm:$0xf] %v302
    %335 = vst [vmem:[#allocation7 + $0x28] sm:$0xf] %v303
    %336 = vst [vmem:[#allocation7 + $0x2c] sm:$0xf] %v304
    %337 = vst [vmem:[#allocation7 + $0x30] sm:$0xf] %v305
    %338 = vst [vmem:[#allocation7 + $0x34] sm:$0xf] %v306
    %339 = vst [vmem:[#allocation7 + $0x38] sm:$0xf] %v307
    %340 = vst [vmem:[#allocation7 + $0x3c] sm:$0xf] %v308
    // Predicated region
    $region22: #{tpu_custom_call.1} parent=1 // pred_check
      _
    $region23: #{tpu_custom_call.1} parent=1 // pred_check_branch
      %342 = sbr.rel (0) target = $region25
    $region24: #{tpu_custom_call.1} parent=1 // pred_region
      %s344 = ssub.s32 1024, 1024
      %345 = vsyncadd [#allocation4], %s344
      %s346 = sshll.u32 [#allocation7], 4
      %s347 = int_to_ptr.vmem [resolvable:$true] %s346
      %352 = dma.vmem_to_hbm [thread:$0]  %s347, 1024, %s3, [#allocation4], 64, 64, 4
    $region25: #{tpu_custom_call.1} parent=1 // pred_fallthru
      _
    // Predicated region
    $region26: #{tpu_custom_call.1} parent=1 // pred_check
      _
    $region27: #{tpu_custom_call.1} parent=1 // pred_check_branch
      %354 = sbr.rel (0) target = $region29
    $region28: #{tpu_custom_call.1} parent=1 // pred_region
      %355 = dma.done [#allocation4], 1024
    $region29: #{tpu_custom_call.1} parent=1 // pred_fallthru
      _
    %356 = vsyncpa [#allocation3], 1
    %357 = vsyncpa [#allocation6], 1
    %358 = vsyncpa [#allocation4], 1

</llo_original>
